<compile_context>
chip_gen: v7x
topology: tpu7x:2x2x1
jax: 0.10.0
libtpu: 0.0.40
codegen_flags: <defaults>
</compile_context>

<pallas_src>
import functools

import jax
import jax.numpy as jnp
from jax import lax
from jax.experimental import pallas as pl
from jax.experimental.pallas import tpu as pltpu

EPS = 1e-5


def _shift_lanes(v, delta):
    """result[:, m] = v[:, m + delta], zero-filled where m + delta is out of range."""
    c, m = v.shape
    if delta == 0:
        return v
    if delta > 0:
        pad = jnp.zeros((c, delta), v.dtype)
        return jnp.concatenate([v[:, delta:], pad], axis=1)
    pad = jnp.zeros((c, -delta), v.dtype)
    return jnp.concatenate([pad, v[:, :m + delta]], axis=1)


def _block_kernel(x_ref, mask_ref,
                  w1_ref, g1_ref, be1_ref,
                  w2_ref, g2_ref, be2_ref,
                  out_ref, *, W):
    C, M = x_ref.shape
    x = x_ref[...]                  # (C, M): conv1 input AND the residual
    masks = mask_ref[...]           # (9, M): 0/1 validity of each 3x3 tap

    def im2col(v):
        # (9*C, M) patch matrix; row k*C + cin = channel cin shifted by tap k.
        # Static lane shifts + masks replace the zero-padded scratch buffer.
        taps = []
        for k in range(9):
            oy, ox = k // 3 - 1, k % 3 - 1
            delta = oy * W + ox
            taps.append(_shift_lanes(v, delta) * masks[k:k + 1, :])
        return jnp.concatenate(taps, axis=0)

    def bn(y, g_ref, be_ref):
        # Training-mode BatchNorm: one-pass biased batch stats over M = N*H*W.
        inv_m = 1.0 / M
        mean = jnp.sum(y, axis=1, keepdims=True) * inv_m
        var = jnp.sum(y * y, axis=1, keepdims=True) * inv_m - mean * mean
        scale = lax.rsqrt(var + EPS) * g_ref[...]
        return (y - mean) * scale + be_ref[...]

    # conv1 (single K=9C MXU matmul; bias omitted — cancelled by BN) -> BN1 -> ReLU
    y1 = jnp.dot(w1_ref[...], im2col(x), preferred_element_type=jnp.float32)
    h = jnp.maximum(bn(y1, g1_ref, be1_ref), 0.0)

    # conv2 -> BN2 -> residual add -> ReLU   (lane-dense (C, M) store)
    y2 = jnp.dot(w2_ref[...], im2col(h), preferred_element_type=jnp.float32)
    out_ref[...] = jnp.maximum(bn(y2, g2_ref, be2_ref) + x, 0.0)


def block_forward(x_nchw, w1, b1, g1, be1, w2, b2, g2, be2):
    """x_nchw: (N, C, H, W) f32. w*: PyTorch (Cout, Cin, 3, 3).
    b1/b2 are accepted for interface parity but are mathematically dead:
    a conv bias feeding a training-mode BatchNorm is cancelled by the mean."""
    del b1, b2
    N, C, H, W = x_nchw.shape
    assert w1.shape == (C, C, 3, 3) and w2.shape == (C, C, 3, 3), (
        "residual Block requires in_channels == out_channels and stride == 1")
    M = N * H * W

    # Channel-major, spatially flattened (lane dim = M) — layout plumbing in XLA.
    x_cm = jnp.transpose(x_nchw, (1, 0, 2, 3)).reshape(C, M).astype(jnp.float32)

    # (9, M) validity masks for the nine 3x3 taps (stride=1, padding=1).
    yb = jnp.broadcast_to(jnp.arange(H, dtype=jnp.int32)[None, :, None],
                          (N, H, W)).reshape(M)
    xb = jnp.broadcast_to(jnp.arange(W, dtype=jnp.int32)[None, None, :],
                          (N, H, W)).reshape(M)
    mask_list = []
    for k in range(9):
        oy, ox = k // 3 - 1, k % 3 - 1
        mask_list.append((yb + oy >= 0) & (yb + oy < H) &
                         (xb + ox >= 0) & (xb + ox < W))
    masks = jnp.stack(mask_list, axis=0).astype(jnp.float32)

    # (Cout, Cin, 3, 3) -> (Cout, 9*Cin), column index = (dy*3+dx)*Cin + cin.
    to_mat = lambda w: jnp.transpose(w, (0, 2, 3, 1)).reshape(C, 9 * C).astype(jnp.float32)
    col = lambda v: v.reshape(C, 1).astype(jnp.float32)
    full = lambda shape: pl.BlockSpec(shape, lambda i: (0,) * len(shape))

    # TODO(synk): at real ResNet-18 sizes, tile N/H on a 'parallel' grid axis
    # and add an accumulate-then-finalize cross-tile reduction for the
    # BatchNorm batch statistics; this single-program form assumes the whole
    # activation fits comfortably in VMEM (true for these small shapes).
    out_cm = pl.pallas_call(
        functools.partial(_block_kernel, W=W),
        out_shape=jax.ShapeDtypeStruct((C, M), jnp.float32),
        grid=(1,),
        in_specs=[
            full((C, M)),          # input (also serves as the residual)
            full((9, M)),          # tap validity masks
            full((C, 9 * C)), full((C, 1)), full((C, 1)),   # conv1 / BN1
            full((C, 9 * C)), full((C, 1)), full((C, 1)),   # conv2 / BN2
        ],
        out_specs=full((C, M)),
        compiler_params=pltpu.CompilerParams(
            dimension_semantics=("arbitrary",),
            vmem_limit_bytes=32 * 1024 * 1024),
    )(x_cm, masks, to_mat(w1), col(g1), col(be1), to_mat(w2), col(g2), col(be2))

    return jnp.transpose(out_cm.reshape(C, N, H, W), (1, 0, 2, 3))


def block_reference(x, w1, b1, g1, be1, w2, b2, g2, be2):
    """Pure-JAX NCHW reference with conv biases and two-pass training-mode BN."""
    def conv(x, w, b):
        y = lax.conv_general_dilated(
            x, w, window_strides=(1, 1), padding="SAME",
            dimension_numbers=("NCHW", "OIHW", "NCHW"))
        return y + b[None, :, None, None]

    def bn(y, g, be):
        m = jnp.mean(y, axis=(0, 2, 3), keepdims=True)
        v = jnp.mean((y - m) ** 2, axis=(0, 2, 3), keepdims=True)
        return (y - m) * lax.rsqrt(v + EPS) * g[None, :, None, None] \
            + be[None, :, None, None]

    h = jax.nn.relu(bn(conv(x, w1, b1), g1, be1))
    h2 = bn(conv(h, w2, b2), g2, be2)
    return jax.nn.relu(h2 + x)


if __name__ == "__main__":
    # Small shapes: batch=2, channels=4 (in == out, stride=1), spatial=16.
    N, C, H, W = 2, 4, 16, 16

    key = jax.random.PRNGKey(0)
    k1, k2, k3, k4, kx = jax.random.split(key, 5)

    # PyTorch-style conv weights (Cout, Cin, 3, 3) and biases (Cout,).
    w1 = 0.1 * jax.random.normal(k1, (C, C, 3, 3), jnp.float32)
    w2 = 0.1 * jax.random.normal(k2, (C, C, 3, 3), jnp.float32)
    b1 = 0.1 * jax.random.normal(k3, (C,), jnp.float32)
    b2 = 0.1 * jax.random.normal(k4, (C,), jnp.float32)

    # BatchNorm affine params (deterministic, non-trivial).
    g1 = 1.0 + 0.1 * jnp.linspace(-1.0, 1.0, C, dtype=jnp.float32)
    be1 = 0.05 * jnp.linspace(-1.0, 1.0, C, dtype=jnp.float32)
    g2 = 1.0 - 0.1 * jnp.linspace(-1.0, 1.0, C, dtype=jnp.float32)
    be2 = -0.05 * jnp.linspace(-1.0, 1.0, C, dtype=jnp.float32)

    # PyTorch-layout input (NCHW).
    x = jax.random.normal(kx, (N, C, H, W), jnp.float32)

    out = block_forward(x, w1, b1, g1, be1, w2, b2, g2, be2)
    out = jax.block_until_ready(out)

    ref = block_reference(x, w1, b1, g1, be1, w2, b2, g2, be2)
    ref = jax.block_until_ready(ref)

    assert out.shape == (N, C, H, W)
    assert jnp.allclose(out, ref, atol=1e-3, rtol=1e-3), (
        float(jnp.max(jnp.abs(out - ref))))

    print("KERNEL_OK")
</pallas_src>

<mosaic_0001>
module attributes {stable_mosaic.version = 11 : i64} {
  func.func @_block_kernel(%arg0: i32, %arg1: memref<4x512xf32, #tpu.memory_space<vmem>>, %arg2: memref<9x512xf32, #tpu.memory_space<vmem>>, %arg3: memref<4x36xf32, #tpu.memory_space<vmem>>, %arg4: memref<4x1xf32, #tpu.memory_space<vmem>>, %arg5: memref<4x1xf32, #tpu.memory_space<vmem>>, %arg6: memref<4x36xf32, #tpu.memory_space<vmem>>, %arg7: memref<4x1xf32, #tpu.memory_space<vmem>>, %arg8: memref<4x1xf32, #tpu.memory_space<vmem>>, %arg9: memref<4x512xf32, #tpu.memory_space<vmem>>) attributes {dimension_semantics = [#tpu.dimension_semantics<arbitrary>], iteration_bounds = array<i64: 1>, scalar_prefetch = 0 : i64, scratch_operands = 0 : i64, tpu.core_type = #tpu.core_type<tc>, window_params = [{pipeline_mode = #tpu.pipeline_mode<synchronous>, transform_indices = @transform_0, window_bounds = array<i64: 4, 512>}, {pipeline_mode = #tpu.pipeline_mode<synchronous>, transform_indices = @transform_1, window_bounds = array<i64: 9, 512>}, {pipeline_mode = #tpu.pipeline_mode<synchronous>, transform_indices = @transform_2, window_bounds = array<i64: 4, 36>}, {pipeline_mode = #tpu.pipeline_mode<synchronous>, transform_indices = @transform_3, window_bounds = array<i64: 4, 1>}, {pipeline_mode = #tpu.pipeline_mode<synchronous>, transform_indices = @transform_4, window_bounds = array<i64: 4, 1>}, {pipeline_mode = #tpu.pipeline_mode<synchronous>, transform_indices = @transform_5, window_bounds = array<i64: 4, 36>}, {pipeline_mode = #tpu.pipeline_mode<synchronous>, transform_indices = @transform_6, window_bounds = array<i64: 4, 1>}, {pipeline_mode = #tpu.pipeline_mode<synchronous>, transform_indices = @transform_7, window_bounds = array<i64: 4, 1>}, {pipeline_mode = #tpu.pipeline_mode<synchronous>, transform_indices = @transform_8, window_bounds = array<i64: 4, 512>}]} {
    %c0 = arith.constant 0 : index
    %c0_0 = arith.constant 0 : index
    %0 = vector.load %arg1[%c0, %c0_0] : memref<4x512xf32, #tpu.memory_space<vmem>>, vector<4x512xf32>
    %c0_1 = arith.constant 0 : index
    %c0_2 = arith.constant 0 : index
    %1 = vector.load %arg2[%c0_1, %c0_2] : memref<9x512xf32, #tpu.memory_space<vmem>>, vector<9x512xf32>
    %c0_3 = arith.constant 0 : index
    %c0_4 = arith.constant 0 : index
    %2 = vector.load %arg3[%c0_3, %c0_4] : memref<4x36xf32, #tpu.memory_space<vmem>>, vector<4x36xf32>
    %cst = arith.constant 0.000000e+00 : f32
    %3 = vector.broadcast %cst : f32 to vector<4x17xf32>
    %4 = vector.extract_strided_slice %0 {offsets = [0, 0], sizes = [4, 495], strides = [1, 1]} : vector<4x512xf32> to vector<4x495xf32>
    %5 = tpu.concatenate %3, %4 in 1 : vector<4x17xf32>, vector<4x495xf32> -> vector<4x512xf32>
    %6 = vector.extract_strided_slice %1 {offsets = [0, 0], sizes = [1, 512], strides = [1, 1]} : vector<9x512xf32> to vector<1x512xf32>
    %7 = vector.broadcast %6 : vector<1x512xf32> to vector<4x512xf32>
    %8 = arith.mulf %5, %7 : vector<4x512xf32>
    %cst_5 = arith.constant 0.000000e+00 : f32
    %9 = vector.broadcast %cst_5 : f32 to vector<4x16xf32>
    %10 = vector.extract_strided_slice %0 {offsets = [0, 0], sizes = [4, 496], strides = [1, 1]} : vector<4x512xf32> to vector<4x496xf32>
    %11 = tpu.concatenate %9, %10 in 1 : vector<4x16xf32>, vector<4x496xf32> -> vector<4x512xf32>
    %12 = vector.extract_strided_slice %1 {offsets = [1, 0], sizes = [1, 512], strides = [1, 1]} : vector<9x512xf32> to vector<1x512xf32>
    %13 = vector.broadcast %12 : vector<1x512xf32> to vector<4x512xf32>
    %14 = arith.mulf %11, %13 : vector<4x512xf32>
    %cst_6 = arith.constant 0.000000e+00 : f32
    %15 = vector.broadcast %cst_6 : f32 to vector<4x15xf32>
    %16 = vector.extract_strided_slice %0 {offsets = [0, 0], sizes = [4, 497], strides = [1, 1]} : vector<4x512xf32> to vector<4x497xf32>
    %17 = tpu.concatenate %15, %16 in 1 : vector<4x15xf32>, vector<4x497xf32> -> vector<4x512xf32>
    %18 = vector.extract_strided_slice %1 {offsets = [2, 0], sizes = [1, 512], strides = [1, 1]} : vector<9x512xf32> to vector<1x512xf32>
    %19 = vector.broadcast %18 : vector<1x512xf32> to vector<4x512xf32>
    %20 = arith.mulf %17, %19 : vector<4x512xf32>
    %cst_7 = arith.constant 0.000000e+00 : f32
    %21 = vector.broadcast %cst_7 : f32 to vector<4x1xf32>
    %22 = vector.extract_strided_slice %0 {offsets = [0, 0], sizes = [4, 511], strides = [1, 1]} : vector<4x512xf32> to vector<4x511xf32>
    %23 = tpu.concatenate %21, %22 in 1 : vector<4x1xf32>, vector<4x511xf32> -> vector<4x512xf32>
    %24 = vector.extract_strided_slice %1 {offsets = [3, 0], sizes = [1, 512], strides = [1, 1]} : vector<9x512xf32> to vector<1x512xf32>
    %25 = vector.broadcast %24 : vector<1x512xf32> to vector<4x512xf32>
    %26 = arith.mulf %23, %25 : vector<4x512xf32>
    %27 = vector.extract_strided_slice %1 {offsets = [4, 0], sizes = [1, 512], strides = [1, 1]} : vector<9x512xf32> to vector<1x512xf32>
    %28 = vector.broadcast %27 : vector<1x512xf32> to vector<4x512xf32>
    %29 = arith.mulf %0, %28 : vector<4x512xf32>
    %cst_8 = arith.constant 0.000000e+00 : f32
    %30 = vector.broadcast %cst_8 : f32 to vector<4x1xf32>
    %31 = vector.extract_strided_slice %0 {offsets = [0, 1], sizes = [4, 511], strides = [1, 1]} : vector<4x512xf32> to vector<4x511xf32>
    %32 = tpu.concatenate %31, %30 in 1 : vector<4x511xf32>, vector<4x1xf32> -> vector<4x512xf32>
    %33 = vector.extract_strided_slice %1 {offsets = [5, 0], sizes = [1, 512], strides = [1, 1]} : vector<9x512xf32> to vector<1x512xf32>
    %34 = vector.broadcast %33 : vector<1x512xf32> to vector<4x512xf32>
    %35 = arith.mulf %32, %34 : vector<4x512xf32>
    %cst_9 = arith.constant 0.000000e+00 : f32
    %36 = vector.broadcast %cst_9 : f32 to vector<4x15xf32>
    %37 = vector.extract_strided_slice %0 {offsets = [0, 15], sizes = [4, 497], strides = [1, 1]} : vector<4x512xf32> to vector<4x497xf32>
    %38 = tpu.concatenate %37, %36 in 1 : vector<4x497xf32>, vector<4x15xf32> -> vector<4x512xf32>
    %39 = vector.extract_strided_slice %1 {offsets = [6, 0], sizes = [1, 512], strides = [1, 1]} : vector<9x512xf32> to vector<1x512xf32>
    %40 = vector.broadcast %39 : vector<1x512xf32> to vector<4x512xf32>
    %41 = arith.mulf %38, %40 : vector<4x512xf32>
    %cst_10 = arith.constant 0.000000e+00 : f32
    %42 = vector.broadcast %cst_10 : f32 to vector<4x16xf32>
    %43 = vector.extract_strided_slice %0 {offsets = [0, 16], sizes = [4, 496], strides = [1, 1]} : vector<4x512xf32> to vector<4x496xf32>
    %44 = tpu.concatenate %43, %42 in 1 : vector<4x496xf32>, vector<4x16xf32> -> vector<4x512xf32>
    %45 = vector.extract_strided_slice %1 {offsets = [7, 0], sizes = [1, 512], strides = [1, 1]} : vector<9x512xf32> to vector<1x512xf32>
    %46 = vector.broadcast %45 : vector<1x512xf32> to vector<4x512xf32>
    %47 = arith.mulf %44, %46 : vector<4x512xf32>
    %cst_11 = arith.constant 0.000000e+00 : f32
    %48 = vector.broadcast %cst_11 : f32 to vector<4x17xf32>
    %49 = vector.extract_strided_slice %0 {offsets = [0, 17], sizes = [4, 495], strides = [1, 1]} : vector<4x512xf32> to vector<4x495xf32>
    %50 = tpu.concatenate %49, %48 in 1 : vector<4x495xf32>, vector<4x17xf32> -> vector<4x512xf32>
    %51 = vector.extract_strided_slice %1 {offsets = [8, 0], sizes = [1, 512], strides = [1, 1]} : vector<9x512xf32> to vector<1x512xf32>
    %52 = vector.broadcast %51 : vector<1x512xf32> to vector<4x512xf32>
    %53 = arith.mulf %50, %52 : vector<4x512xf32>
    %54 = tpu.concatenate %8, %14, %20, %26, %29, %35, %41, %47, %53 in 0 : vector<4x512xf32>, vector<4x512xf32>, vector<4x512xf32>, vector<4x512xf32>, vector<4x512xf32>, vector<4x512xf32>, vector<4x512xf32>, vector<4x512xf32>, vector<4x512xf32> -> vector<36x512xf32>
    %cst_12 = arith.constant dense<0.000000e+00> : vector<4x512xf32>
    %55 = tpu.matmul %2, %54, %cst_12 {dimension_numbers = #tpu.dot_dimension_numbers<[1], [0], [0], [1], [0, 0, 1, 1], [], []>} : vector<4x36xf32>, vector<36x512xf32>, vector<4x512xf32> -> vector<4x512xf32>
    %cst_13 = arith.constant dense<0.000000e+00> : vector<4xf32>
    %56 = vector.multi_reduction <add>, %55, %cst_13 [1] : vector<4x512xf32> to vector<4xf32>
    %57 = vector.shape_cast %56 : vector<4xf32> to vector<4x1xf32>
    %cst_14 = arith.constant 0.001953125 : f32
    %58 = vector.broadcast %cst_14 : f32 to vector<4x1xf32>
    %59 = arith.mulf %57, %58 : vector<4x1xf32>
    %60 = arith.mulf %55, %55 : vector<4x512xf32>
    %cst_15 = arith.constant dense<0.000000e+00> : vector<4xf32>
    %61 = vector.multi_reduction <add>, %60, %cst_15 [1] : vector<4x512xf32> to vector<4xf32>
    %62 = vector.shape_cast %61 : vector<4xf32> to vector<4x1xf32>
    %cst_16 = arith.constant 0.001953125 : f32
    %63 = vector.broadcast %cst_16 : f32 to vector<4x1xf32>
    %64 = arith.mulf %62, %63 : vector<4x1xf32>
    %65 = arith.mulf %59, %59 : vector<4x1xf32>
    %66 = arith.subf %64, %65 : vector<4x1xf32>
    %cst_17 = arith.constant 9.99999974E-6 : f32
    %67 = vector.broadcast %cst_17 : f32 to vector<4x1xf32>
    %68 = arith.addf %66, %67 : vector<4x1xf32>
    %69 = math.rsqrt %68 : vector<4x1xf32>
    %c0_18 = arith.constant 0 : index
    %c0_19 = arith.constant 0 : index
    %70 = vector.load %arg4[%c0_18, %c0_19] : memref<4x1xf32, #tpu.memory_space<vmem>>, vector<4x1xf32>
    %71 = arith.mulf %69, %70 : vector<4x1xf32>
    %72 = vector.broadcast %59 : vector<4x1xf32> to vector<4x512xf32>
    %73 = arith.subf %55, %72 : vector<4x512xf32>
    %74 = vector.broadcast %71 : vector<4x1xf32> to vector<4x512xf32>
    %75 = arith.mulf %73, %74 : vector<4x512xf32>
    %c0_20 = arith.constant 0 : index
    %c0_21 = arith.constant 0 : index
    %76 = vector.load %arg5[%c0_20, %c0_21] : memref<4x1xf32, #tpu.memory_space<vmem>>, vector<4x1xf32>
    %77 = vector.broadcast %76 : vector<4x1xf32> to vector<4x512xf32>
    %78 = arith.addf %75, %77 : vector<4x512xf32>
    %cst_22 = arith.constant 0.000000e+00 : f32
    %79 = vector.broadcast %cst_22 : f32 to vector<4x512xf32>
    %80 = arith.maximumf %78, %79 : vector<4x512xf32>
    %c0_23 = arith.constant 0 : index
    %c0_24 = arith.constant 0 : index
    %81 = vector.load %arg6[%c0_23, %c0_24] : memref<4x36xf32, #tpu.memory_space<vmem>>, vector<4x36xf32>
    %cst_25 = arith.constant 0.000000e+00 : f32
    %82 = vector.broadcast %cst_25 : f32 to vector<4x17xf32>
    %83 = vector.extract_strided_slice %80 {offsets = [0, 0], sizes = [4, 495], strides = [1, 1]} : vector<4x512xf32> to vector<4x495xf32>
    %84 = tpu.concatenate %82, %83 in 1 : vector<4x17xf32>, vector<4x495xf32> -> vector<4x512xf32>
    %85 = vector.extract_strided_slice %1 {offsets = [0, 0], sizes = [1, 512], strides = [1, 1]} : vector<9x512xf32> to vector<1x512xf32>
    %86 = vector.broadcast %85 : vector<1x512xf32> to vector<4x512xf32>
    %87 = arith.mulf %84, %86 : vector<4x512xf32>
    %cst_26 = arith.constant 0.000000e+00 : f32
    %88 = vector.broadcast %cst_26 : f32 to vector<4x16xf32>
    %89 = vector.extract_strided_slice %80 {offsets = [0, 0], sizes = [4, 496], strides = [1, 1]} : vector<4x512xf32> to vector<4x496xf32>
    %90 = tpu.concatenate %88, %89 in 1 : vector<4x16xf32>, vector<4x496xf32> -> vector<4x512xf32>
    %91 = vector.extract_strided_slice %1 {offsets = [1, 0], sizes = [1, 512], strides = [1, 1]} : vector<9x512xf32> to vector<1x512xf32>
    %92 = vector.broadcast %91 : vector<1x512xf32> to vector<4x512xf32>
    %93 = arith.mulf %90, %92 : vector<4x512xf32>
    %cst_27 = arith.constant 0.000000e+00 : f32
    %94 = vector.broadcast %cst_27 : f32 to vector<4x15xf32>
    %95 = vector.extract_strided_slice %80 {offsets = [0, 0], sizes = [4, 497], strides = [1, 1]} : vector<4x512xf32> to vector<4x497xf32>
    %96 = tpu.concatenate %94, %95 in 1 : vector<4x15xf32>, vector<4x497xf32> -> vector<4x512xf32>
    %97 = vector.extract_strided_slice %1 {offsets = [2, 0], sizes = [1, 512], strides = [1, 1]} : vector<9x512xf32> to vector<1x512xf32>
    %98 = vector.broadcast %97 : vector<1x512xf32> to vector<4x512xf32>
    %99 = arith.mulf %96, %98 : vector<4x512xf32>
    %cst_28 = arith.constant 0.000000e+00 : f32
    %100 = vector.broadcast %cst_28 : f32 to vector<4x1xf32>
    %101 = vector.extract_strided_slice %80 {offsets = [0, 0], sizes = [4, 511], strides = [1, 1]} : vector<4x512xf32> to vector<4x511xf32>
    %102 = tpu.concatenate %100, %101 in 1 : vector<4x1xf32>, vector<4x511xf32> -> vector<4x512xf32>
    %103 = vector.extract_strided_slice %1 {offsets = [3, 0], sizes = [1, 512], strides = [1, 1]} : vector<9x512xf32> to vector<1x512xf32>
    %104 = vector.broadcast %103 : vector<1x512xf32> to vector<4x512xf32>
    %105 = arith.mulf %102, %104 : vector<4x512xf32>
    %106 = vector.extract_strided_slice %1 {offsets = [4, 0], sizes = [1, 512], strides = [1, 1]} : vector<9x512xf32> to vector<1x512xf32>
    %107 = vector.broadcast %106 : vector<1x512xf32> to vector<4x512xf32>
    %108 = arith.mulf %80, %107 : vector<4x512xf32>
    %cst_29 = arith.constant 0.000000e+00 : f32
    %109 = vector.broadcast %cst_29 : f32 to vector<4x1xf32>
    %110 = vector.extract_strided_slice %80 {offsets = [0, 1], sizes = [4, 511], strides = [1, 1]} : vector<4x512xf32> to vector<4x511xf32>
    %111 = tpu.concatenate %110, %109 in 1 : vector<4x511xf32>, vector<4x1xf32> -> vector<4x512xf32>
    %112 = vector.extract_strided_slice %1 {offsets = [5, 0], sizes = [1, 512], strides = [1, 1]} : vector<9x512xf32> to vector<1x512xf32>
    %113 = vector.broadcast %112 : vector<1x512xf32> to vector<4x512xf32>
    %114 = arith.mulf %111, %113 : vector<4x512xf32>
    %cst_30 = arith.constant 0.000000e+00 : f32
    %115 = vector.broadcast %cst_30 : f32 to vector<4x15xf32>
    %116 = vector.extract_strided_slice %80 {offsets = [0, 15], sizes = [4, 497], strides = [1, 1]} : vector<4x512xf32> to vector<4x497xf32>
    %117 = tpu.concatenate %116, %115 in 1 : vector<4x497xf32>, vector<4x15xf32> -> vector<4x512xf32>
    %118 = vector.extract_strided_slice %1 {offsets = [6, 0], sizes = [1, 512], strides = [1, 1]} : vector<9x512xf32> to vector<1x512xf32>
    %119 = vector.broadcast %118 : vector<1x512xf32> to vector<4x512xf32>
    %120 = arith.mulf %117, %119 : vector<4x512xf32>
    %cst_31 = arith.constant 0.000000e+00 : f32
    %121 = vector.broadcast %cst_31 : f32 to vector<4x16xf32>
    %122 = vector.extract_strided_slice %80 {offsets = [0, 16], sizes = [4, 496], strides = [1, 1]} : vector<4x512xf32> to vector<4x496xf32>
    %123 = tpu.concatenate %122, %121 in 1 : vector<4x496xf32>, vector<4x16xf32> -> vector<4x512xf32>
    %124 = vector.extract_strided_slice %1 {offsets = [7, 0], sizes = [1, 512], strides = [1, 1]} : vector<9x512xf32> to vector<1x512xf32>
    %125 = vector.broadcast %124 : vector<1x512xf32> to vector<4x512xf32>
    %126 = arith.mulf %123, %125 : vector<4x512xf32>
    %cst_32 = arith.constant 0.000000e+00 : f32
    %127 = vector.broadcast %cst_32 : f32 to vector<4x17xf32>
    %128 = vector.extract_strided_slice %80 {offsets = [0, 17], sizes = [4, 495], strides = [1, 1]} : vector<4x512xf32> to vector<4x495xf32>
    %129 = tpu.concatenate %128, %127 in 1 : vector<4x495xf32>, vector<4x17xf32> -> vector<4x512xf32>
    %130 = vector.extract_strided_slice %1 {offsets = [8, 0], sizes = [1, 512], strides = [1, 1]} : vector<9x512xf32> to vector<1x512xf32>
    %131 = vector.broadcast %130 : vector<1x512xf32> to vector<4x512xf32>
    %132 = arith.mulf %129, %131 : vector<4x512xf32>
    %133 = tpu.concatenate %87, %93, %99, %105, %108, %114, %120, %126, %132 in 0 : vector<4x512xf32>, vector<4x512xf32>, vector<4x512xf32>, vector<4x512xf32>, vector<4x512xf32>, vector<4x512xf32>, vector<4x512xf32>, vector<4x512xf32>, vector<4x512xf32> -> vector<36x512xf32>
    %cst_33 = arith.constant dense<0.000000e+00> : vector<4x512xf32>
    %134 = tpu.matmul %81, %133, %cst_33 {dimension_numbers = #tpu.dot_dimension_numbers<[1], [0], [0], [1], [0, 0, 1, 1], [], []>} : vector<4x36xf32>, vector<36x512xf32>, vector<4x512xf32> -> vector<4x512xf32>
    %cst_34 = arith.constant dense<0.000000e+00> : vector<4xf32>
    %135 = vector.multi_reduction <add>, %134, %cst_34 [1] : vector<4x512xf32> to vector<4xf32>
    %136 = vector.shape_cast %135 : vector<4xf32> to vector<4x1xf32>
    %cst_35 = arith.constant 0.001953125 : f32
    %137 = vector.broadcast %cst_35 : f32 to vector<4x1xf32>
    %138 = arith.mulf %136, %137 : vector<4x1xf32>
    %139 = arith.mulf %134, %134 : vector<4x512xf32>
    %cst_36 = arith.constant dense<0.000000e+00> : vector<4xf32>
    %140 = vector.multi_reduction <add>, %139, %cst_36 [1] : vector<4x512xf32> to vector<4xf32>
    %141 = vector.shape_cast %140 : vector<4xf32> to vector<4x1xf32>
    %cst_37 = arith.constant 0.001953125 : f32
    %142 = vector.broadcast %cst_37 : f32 to vector<4x1xf32>
    %143 = arith.mulf %141, %142 : vector<4x1xf32>
    %144 = arith.mulf %138, %138 : vector<4x1xf32>
    %145 = arith.subf %143, %144 : vector<4x1xf32>
    %cst_38 = arith.constant 9.99999974E-6 : f32
    %146 = vector.broadcast %cst_38 : f32 to vector<4x1xf32>
    %147 = arith.addf %145, %146 : vector<4x1xf32>
    %148 = math.rsqrt %147 : vector<4x1xf32>
    %c0_39 = arith.constant 0 : index
    %c0_40 = arith.constant 0 : index
    %149 = vector.load %arg7[%c0_39, %c0_40] : memref<4x1xf32, #tpu.memory_space<vmem>>, vector<4x1xf32>
    %150 = arith.mulf %148, %149 : vector<4x1xf32>
    %151 = vector.broadcast %138 : vector<4x1xf32> to vector<4x512xf32>
    %152 = arith.subf %134, %151 : vector<4x512xf32>
    %153 = vector.broadcast %150 : vector<4x1xf32> to vector<4x512xf32>
    %154 = arith.mulf %152, %153 : vector<4x512xf32>
    %c0_41 = arith.constant 0 : index
    %c0_42 = arith.constant 0 : index
    %155 = vector.load %arg8[%c0_41, %c0_42] : memref<4x1xf32, #tpu.memory_space<vmem>>, vector<4x1xf32>
    %156 = vector.broadcast %155 : vector<4x1xf32> to vector<4x512xf32>
    %157 = arith.addf %154, %156 : vector<4x512xf32>
    %158 = arith.addf %157, %0 : vector<4x512xf32>
    %cst_43 = arith.constant 0.000000e+00 : f32
    %159 = vector.broadcast %cst_43 : f32 to vector<4x512xf32>
    %160 = arith.maximumf %158, %159 : vector<4x512xf32>
    %c0_44 = arith.constant 0 : index
    %c0_45 = arith.constant 0 : index
    %161 = vector.load %arg9[%c0_44, %c0_45] : memref<4x512xf32, #tpu.memory_space<vmem>>, vector<4x512xf32>
    tpu.vector_store %arg9[%c0_44, %c0_45], %160 {strides = array<i32>} : memref<4x512xf32, #tpu.memory_space<vmem>>, vector<4x512xf32>,
    return
  }
  func.func @transform_0(%arg0: i32) -> (i32, i32) {
    %c0_i32 = arith.constant 0 : i32
    %c0_i32_0 = arith.constant 0 : i32
    %c0_i32_1 = arith.constant 0 : i32
    return %c0_i32, %c0_i32_0 : i32, i32
  }
  func.func @transform_1(%arg0: i32) -> (i32, i32) {
    %c0_i32 = arith.constant 0 : i32
    %c0_i32_0 = arith.constant 0 : i32
    %c0_i32_1 = arith.constant 0 : i32
    return %c0_i32, %c0_i32_0 : i32, i32
  }
  func.func @transform_2(%arg0: i32) -> (i32, i32) {
    %c0_i32 = arith.constant 0 : i32
    %c0_i32_0 = arith.constant 0 : i32
    %c0_i32_1 = arith.constant 0 : i32
    return %c0_i32, %c0_i32_0 : i32, i32
  }
  func.func @transform_3(%arg0: i32) -> (i32, i32) {
    %c0_i32 = arith.constant 0 : i32
    %c0_i32_0 = arith.constant 0 : i32
    %c0_i32_1 = arith.constant 0 : i32
    return %c0_i32, %c0_i32_0 : i32, i32
  }
  func.func @transform_4(%arg0: i32) -> (i32, i32) {
    %c0_i32 = arith.constant 0 : i32
    %c0_i32_0 = arith.constant 0 : i32
    %c0_i32_1 = arith.constant 0 : i32
    return %c0_i32, %c0_i32_0 : i32, i32
  }
  func.func @transform_5(%arg0: i32) -> (i32, i32) {
    %c0_i32 = arith.constant 0 : i32
    %c0_i32_0 = arith.constant 0 : i32
    %c0_i32_1 = arith.constant 0 : i32
    return %c0_i32, %c0_i32_0 : i32, i32
  }
  func.func @transform_6(%arg0: i32) -> (i32, i32) {
    %c0_i32 = arith.constant 0 : i32
    %c0_i32_0 = arith.constant 0 : i32
    %c0_i32_1 = arith.constant 0 : i32
    return %c0_i32, %c0_i32_0 : i32, i32
  }
  func.func @transform_7(%arg0: i32) -> (i32, i32) {
    %c0_i32 = arith.constant 0 : i32
    %c0_i32_0 = arith.constant 0 : i32
    %c0_i32_1 = arith.constant 0 : i32
    return %c0_i32, %c0_i32_0 : i32, i32
  }
  func.func @transform_8(%arg0: i32) -> (i32, i32) {
    %c0_i32 = arith.constant 0 : i32
    %c0_i32_0 = arith.constant 0 : i32
    %c0_i32_1 = arith.constant 0 : i32
    return %c0_i32, %c0_i32_0 : i32, i32
  }
}

</mosaic_0001>

<llo_original>
// kernel: tpu_custom_call.1
$region0: #{tpu_custom_call.1}
  #allocation0 [shape = 'u32[]', space=smem, size = 0x4, offset = 0x4, fixed_abs, tag = 'smem constant byte address 0x4 - core index']
  #allocation1 [shape = 'u32[144,128]{1,0:T(1,128)}', space=vmem, size = 0x12000, scoped, tag = 'internal scratch']
  %s0 = inlined_call_operand.vmem [shape: f32[4,512], index: 0, kind: input, shape index: {}]
  %s1 = inlined_call_operand.hbm [shape: f32[9,512], index: 1, kind: input, shape index: {}]
  %s2 = inlined_call_operand.vmem [shape: f32[4,36], index: 2, kind: input, shape index: {}]
  %s3 = inlined_call_operand.vmem [shape: f32[4,1], index: 3, kind: input, shape index: {}]
  %s4 = inlined_call_operand.vmem [shape: f32[4,1], index: 4, kind: input, shape index: {}]
  %s5 = inlined_call_operand.vmem [shape: f32[4,36], index: 5, kind: input, shape index: {}]
  %s6 = inlined_call_operand.vmem [shape: f32[4,1], index: 6, kind: input, shape index: {}]
  %s7 = inlined_call_operand.vmem [shape: f32[4,1], index: 7, kind: input, shape index: {}]
  %s8 = inlined_call_operand.hbm [shape: f32[4,512], index: 8, kind: output, shape index: {}]
  %s9 = sld [smem:[#allocation0]]
  $region46: #{tpu_custom_call.1} parent=0
    _
  %s11 = ssub.s32 1, %s9
  %s12 = scalar_select 0, %s11, %s9
  $region1: #{tpu_custom_call.1} parent=0
    #allocation2 [shape = 'u8[32768]{0}', space=vmem, size = 0x8000, scoped, tag = 'input window, operand 1, single buffered']
    #allocation3 [shape = 's32[1]{0}', space=sflag, size = 0x4, scoped, tag = 'scoped memory for tpu_custom_call.1']
    #allocation4 [shape = 's32[1]{0}', space=sflag, size = 0x4, scoped, tag = 'scoped memory for tpu_custom_call.1']
    #allocation5 [shape = 'u8[8192]{0}', space=vmem, size = 0x2000, scoped, tag = 'output window, operand 0, single buffered']
    %13 = vsyncpa [#allocation3], 0
    %14 = vsyncpa [#allocation4], 0
    // Predicated region
    $region2: #{tpu_custom_call.1} parent=1 // pred_check
      _
    $region3: #{tpu_custom_call.1} parent=1 // pred_check_branch
      %16 = sbr.rel (0) target = $region5
    $region4: #{tpu_custom_call.1} parent=1 // pred_region
      _
    $region5: #{tpu_custom_call.1} parent=1 // pred_fallthru
      _
    // Predicated region
    $region6: #{tpu_custom_call.1} parent=1 // pred_check
      _
    $region7: #{tpu_custom_call.1} parent=1 // pred_check_branch
      %18 = sbr.rel (0) target = $region9
    $region8: #{tpu_custom_call.1} parent=1 // pred_region
      %s20 = ssub.s32 1024, 1024
      %21 = vsyncadd [#allocation3], %s20
      %s22 = sshll.u32 [#allocation2], 4
      %s23 = int_to_ptr.vmem [resolvable:$true] %s22
      %28 = dma.hbm_to_vmem [thread:$0]  %s1, 1024, %s23, [#allocation3], 512, 512, 32
    $region9: #{tpu_custom_call.1} parent=1 // pred_fallthru
      _
    // Predicated region
    $region10: #{tpu_custom_call.1} parent=1 // pred_check
      _
    $region11: #{tpu_custom_call.1} parent=1 // pred_check_branch
      %30 = sbr.rel (0) target = $region13
    $region12: #{tpu_custom_call.1} parent=1 // pred_region
      _
    $region13: #{tpu_custom_call.1} parent=1 // pred_fallthru
      _
    // Predicated region
    $region14: #{tpu_custom_call.1} parent=1 // pred_check
      _
    $region15: #{tpu_custom_call.1} parent=1 // pred_check_branch
      %32 = sbr.rel (0) target = $region17
    $region16: #{tpu_custom_call.1} parent=1 // pred_region
      _
    $region17: #{tpu_custom_call.1} parent=1 // pred_fallthru
      _
    // Predicated region
    $region18: #{tpu_custom_call.1} parent=1 // pred_check
      _
    $region19: #{tpu_custom_call.1} parent=1 // pred_check_branch
      %34 = sbr.rel (0) target = $region21
    $region20: #{tpu_custom_call.1} parent=1 // pred_region
      _
    $region21: #{tpu_custom_call.1} parent=1 // pred_fallthru
      _
    // Predicated region
    $region22: #{tpu_custom_call.1} parent=1 // pred_check
      _
    $region23: #{tpu_custom_call.1} parent=1 // pred_check_branch
      %36 = sbr.rel (0) target = $region25
    $region24: #{tpu_custom_call.1} parent=1 // pred_region
      _
    $region25: #{tpu_custom_call.1} parent=1 // pred_fallthru
      _
    // Predicated region
    $region26: #{tpu_custom_call.1} parent=1 // pred_check
      _
    $region27: #{tpu_custom_call.1} parent=1 // pred_check_branch
      %38 = sbr.rel (0) target = $region29
    $region28: #{tpu_custom_call.1} parent=1 // pred_region
      _
    $region29: #{tpu_custom_call.1} parent=1 // pred_fallthru
      _
    // Predicated region
    $region30: #{tpu_custom_call.1} parent=1 // pred_check
      _
    $region31: #{tpu_custom_call.1} parent=1 // pred_check_branch
      %40 = sbr.rel (0) target = $region33
    $region32: #{tpu_custom_call.1} parent=1 // pred_region
      _
    $region33: #{tpu_custom_call.1} parent=1 // pred_fallthru
      _
    // Predicated region
    $region34: #{tpu_custom_call.1} parent=1 // pred_check
      _
    $region35: #{tpu_custom_call.1} parent=1 // pred_check_branch
      %42 = sbr.rel (0) target = $region37
    $region36: #{tpu_custom_call.1} parent=1 // pred_region
      %43 = dma.done [#allocation3], 1024
    $region37: #{tpu_custom_call.1} parent=1 // pred_fallthru
      _
    %v44 = vld [vmem:[%s0] sm:$0xff]
    %v45 = vld [vmem:[%s0 + $0x8] sm:$0xff]
    %v46 = vld [vmem:[#allocation2] sm:$0xff]
    %v47 = vld [vmem:[#allocation2 + $0x8] sm:$0xff]
    %v48 = vld [vmem:[#allocation2 + $0x10] sm:$0xff]
    %v49 = vld [vmem:[#allocation2 + $0x18] sm:$0xff]
    %v50 = vld [vmem:[#allocation2 + $0x20] sm:$0x1]
    %v51 = vld [vmem:[#allocation2 + $0x28] sm:$0x1]
    %v52 = vld [vmem:[#allocation2 + $0x30] sm:$0x1]
    %v53 = vld [vmem:[#allocation2 + $0x38] sm:$0x1]
    %v54 = vld [vmem:[%s2] sm:$0xf]
    %v57 = vcombine.high %v44, %v44
    %v58 = vcombine.high %v45, %v45
    %59 = vrot.lane.b32.xlu0 %v44, 17
    %v60 = vpop.permute.xlu0 %59
    %61 = vrot.lane.b32.xlu0 %v57, 17
    %v62 = vpop.permute.xlu0 %61
    %63 = vrot.lane.b32.xlu0 %v45, 17
    %v64 = vpop.permute.xlu0 %63
    %65 = vrot.lane.b32.xlu0 %v58, 17
    %v66 = vpop.permute.xlu0 %65
    %vm67 = vcmask 138240
    %v68 = vsel %vm67, %v60, %v62
    %v69 = vsel %vm67, %v62, %v64
    %v70 = vsel %vm67, %v64, %v66
    %v75 = vsel %vm67, 0.0, %v60
    %v76 = vlaneseq
    %v77 = vshrl.u32 %v76, 7
    %v78 = vsub.s32 0, %v77
    %v79 = vrot.slane %v46, %v78
    %v80 = vlaneseq
    %v81 = vshrl.u32 %v80, 7
    %v82 = vsub.s32 0, %v81
    %v83 = vrot.slane %v47, %v82
    %v84 = vlaneseq
    %v85 = vshrl.u32 %v84, 7
    %v86 = vsub.s32 0, %v85
    %v87 = vrot.slane %v48, %v86
    %v88 = vlaneseq
    %v89 = vshrl.u32 %v88, 7
    %v90 = vsub.s32 0, %v89
    %v91 = vrot.slane %v49, %v90
    %v92 = vmul.f32 %v75, %v79
    %v93 = vmul.f32 %v68, %v83
    %v94 = vmul.f32 %v69, %v87
    %v95 = vmul.f32 %v70, %v91
    %96 = vrot.lane.b32.xlu0 %v44, 16
    %v97 = vpop.permute.xlu0 %96
    %98 = vrot.lane.b32.xlu0 %v57, 16
    %v99 = vpop.permute.xlu0 %98
    %100 = vrot.lane.b32.xlu0 %v45, 16
    %v101 = vpop.permute.xlu0 %100
    %102 = vrot.lane.b32.xlu0 %v58, 16
    %v103 = vpop.permute.xlu0 %102
    %vm104 = vcmask 130048
    %v105 = vsel %vm104, %v97, %v99
    %v106 = vsel %vm104, %v99, %v101
    %v107 = vsel %vm104, %v101, %v103
    %v112 = vsel %vm104, 0.0, %v97
    %v113 = vlaneseq
    %v114 = vshrl.u32 %v113, 7
    %v115 = vsub.s32 1, %v114
    %v116 = vrot.slane %v46, %v115
    %v117 = vlaneseq
    %v118 = vshrl.u32 %v117, 7
    %v119 = vsub.s32 1, %v118
    %v120 = vrot.slane %v47, %v119
    %v121 = vlaneseq
    %v122 = vshrl.u32 %v121, 7
    %v123 = vsub.s32 1, %v122
    %v124 = vrot.slane %v48, %v123
    %v125 = vlaneseq
    %v126 = vshrl.u32 %v125, 7
    %v127 = vsub.s32 1, %v126
    %v128 = vrot.slane %v49, %v127
    %v129 = vmul.f32 %v112, %v116
    %v130 = vmul.f32 %v105, %v120
    %v131 = vmul.f32 %v106, %v124
    %v132 = vmul.f32 %v107, %v128
    %133 = vrot.lane.b32.xlu0 %v44, 15
    %v134 = vpop.permute.xlu0 %133
    %135 = vrot.lane.b32.xlu0 %v57, 15
    %v136 = vpop.permute.xlu0 %135
    %137 = vrot.lane.b32.xlu0 %v45, 15
    %v138 = vpop.permute.xlu0 %137
    %139 = vrot.lane.b32.xlu0 %v58, 15
    %v140 = vpop.permute.xlu0 %139
    %vm141 = vcmask 121856
    %v142 = vsel %vm141, %v134, %v136
    %v143 = vsel %vm141, %v136, %v138
    %v144 = vsel %vm141, %v138, %v140
    %v149 = vsel %vm141, 0.0, %v134
    %v150 = vlaneseq
    %v151 = vshrl.u32 %v150, 7
    %v152 = vsub.s32 2, %v151
    %v153 = vrot.slane %v46, %v152
    %v154 = vlaneseq
    %v155 = vshrl.u32 %v154, 7
    %v156 = vsub.s32 2, %v155
    %v157 = vrot.slane %v47, %v156
    %v158 = vlaneseq
    %v159 = vshrl.u32 %v158, 7
    %v160 = vsub.s32 2, %v159
    %v161 = vrot.slane %v48, %v160
    %v162 = vlaneseq
    %v163 = vshrl.u32 %v162, 7
    %v164 = vsub.s32 2, %v163
    %v165 = vrot.slane %v49, %v164
    %v166 = vmul.f32 %v149, %v153
    %v167 = vmul.f32 %v142, %v157
    %v168 = vmul.f32 %v143, %v161
    %v169 = vmul.f32 %v144, %v165
    %170 = vrot.lane.b32.xlu0 %v44, 1
    %v171 = vpop.permute.xlu0 %170
    %172 = vrot.lane.b32.xlu0 %v57, 1
    %v173 = vpop.permute.xlu0 %172
    %174 = vrot.lane.b32.xlu0 %v45, 1
    %v175 = vpop.permute.xlu0 %174
    %176 = vrot.lane.b32.xlu0 %v58, 1
    %v177 = vpop.permute.xlu0 %176
    %vm178 = vcmask 7168
    %v179 = vsel %vm178, %v171, %v173
    %v180 = vsel %vm178, %v173, %v175
    %v181 = vsel %vm178, %v175, %v177
    %v186 = vsel %vm178, 0.0, %v171
    %v187 = vlaneseq
    %v188 = vshrl.u32 %v187, 7
    %v189 = vsub.s32 3, %v188
    %v190 = vrot.slane %v46, %v189
    %v191 = vlaneseq
    %v192 = vshrl.u32 %v191, 7
    %v193 = vsub.s32 3, %v192
    %v194 = vrot.slane %v47, %v193
    %v195 = vlaneseq
    %v196 = vshrl.u32 %v195, 7
    %v197 = vsub.s32 3, %v196
    %v198 = vrot.slane %v48, %v197
    %v199 = vlaneseq
    %v200 = vshrl.u32 %v199, 7
    %v201 = vsub.s32 3, %v200
    %v202 = vrot.slane %v49, %v201
    %v203 = vmul.f32 %v186, %v190
    %v204 = vmul.f32 %v179, %v194
    %v205 = vmul.f32 %v180, %v198
    %v206 = vmul.f32 %v181, %v202
    %v207 = vlaneseq
    %v208 = vshrl.u32 %v207, 7
    %v209 = vsub.s32 4, %v208
    %v210 = vrot.slane %v46, %v209
    %v211 = vlaneseq
    %v212 = vshrl.u32 %v211, 7
    %v213 = vsub.s32 4, %v212
    %v214 = vrot.slane %v47, %v213
    %v215 = vlaneseq
    %v216 = vshrl.u32 %v215, 7
    %v217 = vsub.s32 4, %v216
    %v218 = vrot.slane %v48, %v217
    %v219 = vlaneseq
    %v220 = vshrl.u32 %v219, 7
    %v221 = vsub.s32 4, %v220
    %v222 = vrot.slane %v49, %v221
    %v227 = vcombine.low %v210, %v214
    %v228 = vcombine.low %v218, %v222
    %v231 = vmul.f32 %v44, %v227
    %v232 = vmul.f32 %v45, %v228
    %233 = vrot.lane.b32.xlu0 %v44, 127
    %v234 = vpop.permute.xlu0 %233
    %235 = vrot.lane.b32.xlu0 %v57, 127
    %v236 = vpop.permute.xlu0 %235
    %237 = vrot.lane.b32.xlu0 %v45, 127
    %v238 = vpop.permute.xlu0 %237
    %239 = vrot.lane.b32.xlu0 %v58, 127
    %v240 = vpop.permute.xlu0 %239
    %vm241 = vcmask 1039360
    %v242 = vsel %vm241, %v234, %v236
    %v243 = vsel %vm241, %v236, %v238
    %v244 = vsel %vm241, %v238, %v240
    %v249 = vsel %vm241, %v240, 0.0
    %v250 = vlaneseq
    %v251 = vshrl.u32 %v250, 7
    %v252 = vsub.s32 5, %v251
    %v253 = vrot.slane %v46, %v252
    %v254 = vlaneseq
    %v255 = vshrl.u32 %v254, 7
    %v256 = vsub.s32 5, %v255
    %v257 = vrot.slane %v47, %v256
    %v258 = vlaneseq
    %v259 = vshrl.u32 %v258, 7
    %v260 = vsub.s32 5, %v259
    %v261 = vrot.slane %v48, %v260
    %v262 = vlaneseq
    %v263 = vshrl.u32 %v262, 7
    %v264 = vsub.s32 5, %v263
    %v265 = vrot.slane %v49, %v264
    %v266 = vmul.f32 %v242, %v253
    %v267 = vmul.f32 %v243, %v257
    %v268 = vmul.f32 %v244, %v261
    %v269 = vmul.f32 %v249, %v265
    %270 = vrot.lane.b32.xlu0 %v44, 113
    %v271 = vpop.permute.xlu0 %270
    %272 = vrot.lane.b32.xlu0 %v57, 113
    %v273 = vpop.permute.xlu0 %272
    %274 = vrot.lane.b32.xlu0 %v45, 113
    %v275 = vpop.permute.xlu0 %274
    %276 = vrot.lane.b32.xlu0 %v58, 113
    %v277 = vpop.permute.xlu0 %276
    %vm278 = vcmask 924672
    %v279 = vsel %vm278, %v271, %v273
    %v280 = vsel %vm278, %v273, %v275
    %v281 = vsel %vm278, %v275, %v277
    %v286 = vsel %vm278, %v277, 0.0
    %v287 = vlaneseq
    %v288 = vshrl.u32 %v287, 7
    %v289 = vsub.s32 6, %v288
    %v290 = vrot.slane %v46, %v289
    %v291 = vlaneseq
    %v292 = vshrl.u32 %v291, 7
    %v293 = vsub.s32 6, %v292
    %v294 = vrot.slane %v47, %v293
    %v295 = vlaneseq
    %v296 = vshrl.u32 %v295, 7
    %v297 = vsub.s32 6, %v296
    %v298 = vrot.slane %v48, %v297
    %v299 = vlaneseq
    %v300 = vshrl.u32 %v299, 7
    %v301 = vsub.s32 6, %v300
    %v302 = vrot.slane %v49, %v301
    %v303 = vmul.f32 %v279, %v290
    %v304 = vmul.f32 %v280, %v294
    %v305 = vmul.f32 %v281, %v298
    %v306 = vmul.f32 %v286, %v302
    %307 = vrot.lane.b32.xlu0 %v44, 112
    %v308 = vpop.permute.xlu0 %307
    %309 = vrot.lane.b32.xlu0 %v57, 112
    %v310 = vpop.permute.xlu0 %309
    %311 = vrot.lane.b32.xlu0 %v45, 112
    %v312 = vpop.permute.xlu0 %311
    %313 = vrot.lane.b32.xlu0 %v58, 112
    %v314 = vpop.permute.xlu0 %313
    %vm315 = vcmask 916480
    %v316 = vsel %vm315, %v308, %v310
    %v317 = vsel %vm315, %v310, %v312
    %v318 = vsel %vm315, %v312, %v314
    %v323 = vsel %vm315, %v314, 0.0
    %v324 = vlaneseq
    %v325 = vshrl.u32 %v324, 7
    %v326 = vsub.s32 7, %v325
    %v327 = vrot.slane %v46, %v326
    %v328 = vlaneseq
    %v329 = vshrl.u32 %v328, 7
    %v330 = vsub.s32 7, %v329
    %v331 = vrot.slane %v47, %v330
    %v332 = vlaneseq
    %v333 = vshrl.u32 %v332, 7
    %v334 = vsub.s32 7, %v333
    %v335 = vrot.slane %v48, %v334
    %v336 = vlaneseq
    %v337 = vshrl.u32 %v336, 7
    %v338 = vsub.s32 7, %v337
    %v339 = vrot.slane %v49, %v338
    %v340 = vmul.f32 %v316, %v327
    %v341 = vmul.f32 %v317, %v331
    %v342 = vmul.f32 %v318, %v335
    %v343 = vmul.f32 %v323, %v339
    %344 = vrot.lane.b32.xlu0 %v44, 111
    %v345 = vpop.permute.xlu0 %344
    %346 = vrot.lane.b32.xlu0 %v57, 111
    %v347 = vpop.permute.xlu0 %346
    %348 = vrot.lane.b32.xlu0 %v45, 111
    %v349 = vpop.permute.xlu0 %348
    %350 = vrot.lane.b32.xlu0 %v58, 111
    %v351 = vpop.permute.xlu0 %350
    %vm352 = vcmask 908288
    %v353 = vsel %vm352, %v345, %v347
    %v354 = vsel %vm352, %v347, %v349
    %v355 = vsel %vm352, %v349, %v351
    %v360 = vsel %vm352, %v351, 0.0
    %v361 = vlaneseq
    %v362 = vshrl.u32 %v361, 7
    %v363 = vsub.s32 0, %v362
    %v364 = vrot.slane %v50, %v363
    %v365 = vlaneseq
    %v366 = vshrl.u32 %v365, 7
    %v367 = vsub.s32 0, %v366
    %v368 = vrot.slane %v51, %v367
    %v369 = vlaneseq
    %v370 = vshrl.u32 %v369, 7
    %v371 = vsub.s32 0, %v370
    %v372 = vrot.slane %v52, %v371
    %v373 = vlaneseq
    %v374 = vshrl.u32 %v373, 7
    %v375 = vsub.s32 0, %v374
    %v376 = vrot.slane %v53, %v375
    %v377 = vmul.f32 %v353, %v364
    %v378 = vmul.f32 %v354, %v368
    %v379 = vmul.f32 %v355, %v372
    %v380 = vmul.f32 %v360, %v376
    %v385 = vrot.slane %v129, 4
    %v386 = vrot.slane %v130, 4
    %v387 = vrot.slane %v131, 4
    %v388 = vrot.slane %v132, 4
    %v397 = vrot.slane %v203, 4
    %v398 = vrot.slane %v204, 4
    %v399 = vrot.slane %v205, 4
    %v400 = vrot.slane %v206, 4
    %v407 = vcombine.high %v231, %v231
    %v408 = vcombine.high %v232, %v232
    %v415 = vrot.slane %v266, 4
    %v416 = vrot.slane %v267, 4
    %v417 = vrot.slane %v268, 4
    %v418 = vrot.slane %v269, 4
    %v427 = vrot.slane %v340, 4
    %v428 = vrot.slane %v341, 4
    %v429 = vrot.slane %v342, 4
    %v430 = vrot.slane %v343, 4
    %vm435 = vcmask 1043456
    %v436 = vsel %vm435, %v92, %v385
    %v437 = vsel %vm435, %v93, %v386
    %v438 = vsel %vm435, %v94, %v387
    %v439 = vsel %vm435, %v95, %v388
    %v440 = vsel %vm435, %v166, %v397
    %v441 = vsel %vm435, %v167, %v398
    %v442 = vsel %vm435, %v168, %v399
    %v443 = vsel %vm435, %v169, %v400
    %v444 = vsel %vm435, %v231, %v415
    %v445 = vsel %vm435, %v407, %v416
    %v446 = vsel %vm435, %v232, %v417
    %v447 = vsel %vm435, %v408, %v418
    %v448 = vsel %vm435, %v303, %v427
    %v449 = vsel %vm435, %v304, %v428
    %v450 = vsel %vm435, %v305, %v429
    %v451 = vsel %vm435, %v306, %v430
    %vm452 = vcmask 293888
    %v454 = vsel %vm452, %v54, 0
    %v457 = vsel %vm435, %v377, 0
    %v460 = vsel %vm435, %v378, 0
    %v463 = vsel %vm435, %v379, 0
    %v466 = vsel %vm435, %v380, 0
    %468 = vmatprep.subr.mxu0 %v437
    %469 = vmatpush1.msra.mxu0 %v436
    %470 = vmatprep.subr.mxu0 %v441
    %471 = vmatpush1.msra.mxu0 %v440
    %472 = vmatprep.subr.mxu0 %v445
    %473 = vmatpush1.msra.mxu0 %v444
    %474 = vmatprep.subr.mxu0 %v449
    %475 = vmatpush1.msra.mxu0 %v448
    %476 = vmatprep.subr.mxu0 %v460
    %477 = vmatpush1.msra.mxu0 %v457
    %478 = vmatprep.subr.mxu0 0.0
    %479 = vmatpush1.msra.mxu0 0.0
    %480 = vmatprep.subr.mxu0 0.0
    %481 = vmatpush1.msra.mxu0 0.0
    %482 = vmatprep.subr.mxu0 0.0
    %483 = vmatpush1.msra.mxu0 0.0
    %484 = vmatprep.subr.mxu0 0.0
    %485 = vmatpush1.msra.mxu0 0.0
    %486 = vmatprep.subr.mxu0 0.0
    %487 = vmatpush1.msra.mxu0 0.0
    %488 = vmatprep.subr.mxu0 0.0
    %489 = vmatpush1.msra.mxu0 0.0
    %490 = vmatprep.subr.mxu0 0.0
    %491 = vmatpush1.msra.mxu0 0.0
    %492 = vmatprep.subr.mxu0 0.0
    %493 = vmatpush1.msra.mxu0 0.0
    %494 = vmatprep.subr.mxu0 0.0
    %495 = vmatpush1.msra.mxu0 0.0
    %496 = vmatprep.subr.mxu0 0.0
    %497 = vmatpush1.msra.mxu0 0.0
    %498 = vmatprep.subr.mxu0 0.0
    %499 = vmatpush1.msra.mxu0 0.0
    %500 = vmatprep.subr.mxu0 0.0
    %501 = vmatpush1.msra.mxu0 0.0
    %502 = vmatprep.subr.mxu0 0.0
    %503 = vmatpush1.msra.mxu0 0.0
    %504 = vmatprep.subr.mxu0 0.0
    %505 = vmatpush1.msra.mxu0 0.0
    %506 = vmatprep.subr.mxu0 0.0
    %507 = vmatpush1.msra.mxu0 0.0
    %508 = vmatprep.subr.mxu0 0.0
    %509 = vmatpush1.msra.mxu0 0.0
    %510 = vmatprep.subr.mxu0 0.0
    %511 = vmatpush1.msra.mxu0 0.0
    %512 = vmatprep.subr.mxu0 0.0
    %513 = vmatpush1.msra.mxu0 0.0
    %514 = vmatprep.subr.mxu0 0.0
    %515 = vmatpush1.msra.mxu0 0.0
    %516 = vmatprep.subr.mxu0 0.0
    %517 = vmatpush1.msra.mxu0 0.0
    %518 = vmatprep.subr.mxu0 0.0
    %519 = vmatpush1.msra.mxu0 0.0
    %520 = vmatprep.subr.mxu0 0.0
    %521 = vmatpush1.msra.mxu0 0.0
    %522 = vmatprep.subr.mxu0 0.0
    %523 = vmatpush1.msra.mxu0 0.0
    %524 = vmatprep.subr.mxu0 0.0
    %525 = vmatpush1.msra.mxu0 0.0
    %526 = vmatprep.subr.mxu0 0.0
    %527 = vmatpush1.msra.mxu0 0.0
    %528 = vmatprep.subr.mxu0 0.0
    %529 = vmatpush1.msra.mxu0 0.0
    %530 = vmatprep.subr.mxu0 0.0
    %531 = vmatpush1.msra.mxu0 0.0
    %532 = vmatprep.mubr.f32.mxu0 0.0
    %533 = vmatmul.mubr.f32.gmra.mrb[0].mxu0 %v454
    %v534 = vpop.f32.mrb[0].mxu0
    %v535 = vadd.f32 0.0, %v534
    %v536 = vpop.f32.mrb[0].mxu0
    %v537 = vadd.f32 0.0, %v536
    %538 = vdwg.mxu0
    %539 = vmatprep.subr.mxu0 %v439
    %540 = vmatpush1.msra.mxu0 %v438
    %541 = vmatprep.subr.mxu0 %v443
    %542 = vmatpush1.msra.mxu0 %v442
    %543 = vmatprep.subr.mxu0 %v447
    %544 = vmatpush1.msra.mxu0 %v446
    %545 = vmatprep.subr.mxu0 %v451
    %546 = vmatpush1.msra.mxu0 %v450
    %547 = vmatprep.subr.mxu0 %v466
    %548 = vmatpush1.msra.mxu0 %v463
    %549 = vmatprep.subr.mxu0 0.0
    %550 = vmatpush1.msra.mxu0 0.0
    %551 = vmatprep.subr.mxu0 0.0
    %552 = vmatpush1.msra.mxu0 0.0
    %553 = vmatprep.subr.mxu0 0.0
    %554 = vmatpush1.msra.mxu0 0.0
    %555 = vmatprep.subr.mxu0 0.0
    %556 = vmatpush1.msra.mxu0 0.0
    %557 = vmatprep.subr.mxu0 0.0
    %558 = vmatpush1.msra.mxu0 0.0
    %559 = vmatprep.subr.mxu0 0.0
    %560 = vmatpush1.msra.mxu0 0.0
    %561 = vmatprep.subr.mxu0 0.0
    %562 = vmatpush1.msra.mxu0 0.0
    %563 = vmatprep.subr.mxu0 0.0
    %564 = vmatpush1.msra.mxu0 0.0
    %565 = vmatprep.subr.mxu0 0.0
    %566 = vmatpush1.msra.mxu0 0.0
    %567 = vmatprep.subr.mxu0 0.0
    %568 = vmatpush1.msra.mxu0 0.0
    %569 = vmatprep.subr.mxu0 0.0
    %570 = vmatpush1.msra.mxu0 0.0
    %571 = vmatprep.subr.mxu0 0.0
    %572 = vmatpush1.msra.mxu0 0.0
    %573 = vmatprep.subr.mxu0 0.0
    %574 = vmatpush1.msra.mxu0 0.0
    %575 = vmatprep.subr.mxu0 0.0
    %576 = vmatpush1.msra.mxu0 0.0
    %577 = vmatprep.subr.mxu0 0.0
    %578 = vmatpush1.msra.mxu0 0.0
    %579 = vmatprep.subr.mxu0 0.0
    %580 = vmatpush1.msra.mxu0 0.0
    %581 = vmatprep.subr.mxu0 0.0
    %582 = vmatpush1.msra.mxu0 0.0
    %583 = vmatprep.subr.mxu0 0.0
    %584 = vmatpush1.msra.mxu0 0.0
    %585 = vmatprep.subr.mxu0 0.0
    %586 = vmatpush1.msra.mxu0 0.0
    %587 = vmatprep.subr.mxu0 0.0
    %588 = vmatpush1.msra.mxu0 0.0
    %589 = vmatprep.subr.mxu0 0.0
    %590 = vmatpush1.msra.mxu0 0.0
    %591 = vmatprep.subr.mxu0 0.0
    %592 = vmatpush1.msra.mxu0 0.0
    %593 = vmatprep.subr.mxu0 0.0
    %594 = vmatpush1.msra.mxu0 0.0
    %595 = vmatprep.subr.mxu0 0.0
    %596 = vmatpush1.msra.mxu0 0.0
    %597 = vmatprep.subr.mxu0 0.0
    %598 = vmatpush1.msra.mxu0 0.0
    %599 = vmatprep.subr.mxu0 0.0
    %600 = vmatpush1.msra.mxu0 0.0
    %601 = vmatprep.subr.mxu0 0.0
    %602 = vmatpush1.msra.mxu0 0.0
    %603 = vmatprep.mubr.f32.mxu0 0.0
    %604 = vmatmul.mubr.f32.gmra.mrb[0].mxu0 %v454
    %v605 = vpop.f32.mrb[0].mxu0
    %v606 = vadd.f32 0.0, %v605
    %v607 = vpop.f32.mrb[0].mxu0
    %v608 = vadd.f32 0.0, %v607
    %609 = vdwg.mxu0
    %v610 = vsel %vm435, %v535, 0.0
    %v611 = vsel %vm435, %v537, 0.0
    %v612 = vadd.f32 %v610, %v611
    %v613 = vsel %vm435, %v606, 0.0
    %v614 = vadd.f32 %v612, %v613
    %v615 = vsel %vm435, %v608, 0.0
    %v616 = vadd.f32 %v614, %v615
    %617 = vadd.xlane.f32.xlu0 %v616
    %v618 = vpop.xlane.xlu0 %617
    %v619 = vmul.f32 %v618, 0.001953125
    %v620 = vmul.f32 %v535, %v535
    %v621 = vmul.f32 %v537, %v537
    %v622 = vmul.f32 %v606, %v606
    %v623 = vmul.f32 %v608, %v608
    %v624 = vsel %vm435, %v620, 0.0
    %v625 = vsel %vm435, %v621, 0.0
    %v626 = vadd.f32 %v624, %v625
    %v627 = vsel %vm435, %v622, 0.0
    %v628 = vadd.f32 %v626, %v627
    %v629 = vsel %vm435, %v623, 0.0
    %v630 = vadd.f32 %v628, %v629
    %631 = vadd.xlane.f32.xlu0 %v630
    %v632 = vpop.xlane.xlu0 %631
    %v633 = vmul.f32 %v632, 0.001953125
    %v634 = vmul.f32 %v619, %v619
    %v635 = vsub.f32 %v633, %v634
    %v636 = vadd.f32 %v635, 1e-05
    %v637 = vrsqrt.pop %v636
    %v638 = vld [vmem:[%s3] sm:$0xf]
    %v639 = vmul.f32 %v637, %v638
    %v640 = vsub.f32 %v535, %v619
    %v641 = vsub.f32 %v537, %v619
    %v642 = vsub.f32 %v606, %v619
    %v643 = vsub.f32 %v608, %v619
    %645 = vset.pattern.permute.xlu0 0
    %646 = vperm.xlu0 %645, %v639
    %v647 = vpop.permute.xlu0 %646
    %v649 = vmul.f32 %v640, %v647
    %v650 = vmul.f32 %v641, %v647
    %v651 = vmul.f32 %v642, %v647
    %v652 = vmul.f32 %v643, %v647
    %v653 = vld [vmem:[%s4] sm:$0xf]
    %655 = vset.pattern.permute.xlu0 0
    %656 = vperm.xlu0 %655, %v653
    %v657 = vpop.permute.xlu0 %656
    %v659 = vadd.f32 %v649, %v657
    %v660 = vadd.f32 %v650, %v657
    %v661 = vadd.f32 %v651, %v657
    %v662 = vadd.f32 %v652, %v657
    %v663 = vmax.f32 %v659, 0.0
    %v664 = vmax.f32 %v660, 0.0
    %v665 = vmax.f32 %v661, 0.0
    %v666 = vmax.f32 %v662, 0.0
    %v667 = vld [vmem:[%s5] sm:$0xf]
    %672 = vrot.lane.b32.xlu0 %v663, 17
    %v673 = vpop.permute.xlu0 %672
    %674 = vrot.lane.b32.xlu0 %v664, 17
    %v675 = vpop.permute.xlu0 %674
    %676 = vrot.lane.b32.xlu0 %v665, 17
    %v677 = vpop.permute.xlu0 %676
    %678 = vrot.lane.b32.xlu0 %v666, 17
    %v679 = vpop.permute.xlu0 %678
    %v680 = vsel %vm67, %v673, %v675
    %v681 = vsel %vm67, %v675, %v677
    %v682 = vsel %vm67, %v677, %v679
    %v687 = vsel %vm67, 0.0, %v673
    %v688 = vmul.f32 %v687, %v79
    %v689 = vmul.f32 %v680, %v83
    %v690 = vmul.f32 %v681, %v87
    %v691 = vmul.f32 %v682, %v91
    %692 = vrot.lane.b32.xlu0 %v663, 16
    %v693 = vpop.permute.xlu0 %692
    %694 = vrot.lane.b32.xlu0 %v664, 16
    %v695 = vpop.permute.xlu0 %694
    %696 = vrot.lane.b32.xlu0 %v665, 16
    %v697 = vpop.permute.xlu0 %696
    %698 = vrot.lane.b32.xlu0 %v666, 16
    %v699 = vpop.permute.xlu0 %698
    %v700 = vsel %vm104, %v693, %v695
    %v701 = vsel %vm104, %v695, %v697
    %v702 = vsel %vm104, %v697, %v699
    %v707 = vsel %vm104, 0.0, %v693
    %v708 = vmul.f32 %v707, %v116
    %v709 = vmul.f32 %v700, %v120
    %v710 = vmul.f32 %v701, %v124
    %v711 = vmul.f32 %v702, %v128
    %712 = vrot.lane.b32.xlu0 %v663, 15
    %v713 = vpop.permute.xlu0 %712
    %714 = vrot.lane.b32.xlu0 %v664, 15
    %v715 = vpop.permute.xlu0 %714
    %716 = vrot.lane.b32.xlu0 %v665, 15
    %v717 = vpop.permute.xlu0 %716
    %718 = vrot.lane.b32.xlu0 %v666, 15
    %v719 = vpop.permute.xlu0 %718
    %v720 = vsel %vm141, %v713, %v715
    %v721 = vsel %vm141, %v715, %v717
    %v722 = vsel %vm141, %v717, %v719
    %v727 = vsel %vm141, 0.0, %v713
    %v728 = vmul.f32 %v727, %v153
    %v729 = vmul.f32 %v720, %v157
    %v730 = vmul.f32 %v721, %v161
    %v731 = vmul.f32 %v722, %v165
    %732 = vrot.lane.b32.xlu0 %v663, 1
    %v733 = vpop.permute.xlu0 %732
    %734 = vrot.lane.b32.xlu0 %v664, 1
    %v735 = vpop.permute.xlu0 %734
    %736 = vrot.lane.b32.xlu0 %v665, 1
    %v737 = vpop.permute.xlu0 %736
    %738 = vrot.lane.b32.xlu0 %v666, 1
    %v739 = vpop.permute.xlu0 %738
    %v740 = vsel %vm178, %v733, %v735
    %v741 = vsel %vm178, %v735, %v737
    %v742 = vsel %vm178, %v737, %v739
    %v747 = vsel %vm178, 0.0, %v733
    %v748 = vmul.f32 %v747, %v190
    %v749 = vmul.f32 %v740, %v194
    %v750 = vmul.f32 %v741, %v198
    %v751 = vmul.f32 %v742, %v202
    %v752 = vmul.f32 %v663, %v210
    %v753 = vmul.f32 %v664, %v214
    %v754 = vmul.f32 %v665, %v218
    %v755 = vmul.f32 %v666, %v222
    %756 = vrot.lane.b32.xlu0 %v663, 127
    %v757 = vpop.permute.xlu0 %756
    %758 = vrot.lane.b32.xlu0 %v664, 127
    %v759 = vpop.permute.xlu0 %758
    %760 = vrot.lane.b32.xlu0 %v665, 127
    %v761 = vpop.permute.xlu0 %760
    %762 = vrot.lane.b32.xlu0 %v666, 127
    %v763 = vpop.permute.xlu0 %762
    %v764 = vsel %vm241, %v757, %v759
    %v765 = vsel %vm241, %v759, %v761
    %v766 = vsel %vm241, %v761, %v763
    %v771 = vsel %vm241, %v763, 0.0
    %v772 = vmul.f32 %v764, %v253
    %v773 = vmul.f32 %v765, %v257
    %v774 = vmul.f32 %v766, %v261
    %v775 = vmul.f32 %v771, %v265
    %776 = vrot.lane.b32.xlu0 %v663, 113
    %v777 = vpop.permute.xlu0 %776
    %778 = vrot.lane.b32.xlu0 %v664, 113
    %v779 = vpop.permute.xlu0 %778
    %780 = vrot.lane.b32.xlu0 %v665, 113
    %v781 = vpop.permute.xlu0 %780
    %782 = vrot.lane.b32.xlu0 %v666, 113
    %v783 = vpop.permute.xlu0 %782
    %v784 = vsel %vm278, %v777, %v779
    %v785 = vsel %vm278, %v779, %v781
    %v786 = vsel %vm278, %v781, %v783
    %v791 = vsel %vm278, %v783, 0.0
    %v792 = vmul.f32 %v784, %v290
    %v793 = vmul.f32 %v785, %v294
    %v794 = vmul.f32 %v786, %v298
    %v795 = vmul.f32 %v791, %v302
    %796 = vrot.lane.b32.xlu0 %v663, 112
    %v797 = vpop.permute.xlu0 %796
    %798 = vrot.lane.b32.xlu0 %v664, 112
    %v799 = vpop.permute.xlu0 %798
    %800 = vrot.lane.b32.xlu0 %v665, 112
    %v801 = vpop.permute.xlu0 %800
    %802 = vrot.lane.b32.xlu0 %v666, 112
    %v803 = vpop.permute.xlu0 %802
    %v804 = vsel %vm315, %v797, %v799
    %v805 = vsel %vm315, %v799, %v801
    %v806 = vsel %vm315, %v801, %v803
    %v811 = vsel %vm315, %v803, 0.0
    %v812 = vmul.f32 %v804, %v327
    %v813 = vmul.f32 %v805, %v331
    %v814 = vmul.f32 %v806, %v335
    %v815 = vmul.f32 %v811, %v339
    %816 = vrot.lane.b32.xlu0 %v663, 111
    %v817 = vpop.permute.xlu0 %816
    %818 = vrot.lane.b32.xlu0 %v664, 111
    %v819 = vpop.permute.xlu0 %818
    %820 = vrot.lane.b32.xlu0 %v665, 111
    %v821 = vpop.permute.xlu0 %820
    %822 = vrot.lane.b32.xlu0 %v666, 111
    %v823 = vpop.permute.xlu0 %822
    %v824 = vsel %vm352, %v817, %v819
    %v825 = vsel %vm352, %v819, %v821
    %v826 = vsel %vm352, %v821, %v823
    %v831 = vsel %vm352, %v823, 0.0
    %v832 = vmul.f32 %v824, %v364
    %v833 = vmul.f32 %v825, %v368
    %v834 = vmul.f32 %v826, %v372
    %v835 = vmul.f32 %v831, %v376
    %v840 = vrot.slane %v708, 4
    %v841 = vrot.slane %v709, 4
    %v842 = vrot.slane %v710, 4
    %v843 = vrot.slane %v711, 4
    %v852 = vrot.slane %v748, 4
    %v853 = vrot.slane %v749, 4
    %v854 = vrot.slane %v750, 4
    %v855 = vrot.slane %v751, 4
    %v864 = vrot.slane %v772, 4
    %v865 = vrot.slane %v773, 4
    %v866 = vrot.slane %v774, 4
    %v867 = vrot.slane %v775, 4
    %v876 = vrot.slane %v812, 4
    %v877 = vrot.slane %v813, 4
    %v878 = vrot.slane %v814, 4
    %v879 = vrot.slane %v815, 4
    %v884 = vsel %vm435, %v688, %v840
    %v885 = vsel %vm435, %v689, %v841
    %v886 = vsel %vm435, %v690, %v842
    %v887 = vsel %vm435, %v691, %v843
    %v888 = vsel %vm435, %v728, %v852
    %v889 = vsel %vm435, %v729, %v853
    %v890 = vsel %vm435, %v730, %v854
    %v891 = vsel %vm435, %v731, %v855
    %v892 = vsel %vm435, %v752, %v864
    %v893 = vsel %vm435, %v753, %v865
    %v894 = vsel %vm435, %v754, %v866
    %v895 = vsel %vm435, %v755, %v867
    %v896 = vsel %vm435, %v792, %v876
    %v897 = vsel %vm435, %v793, %v877
    %v898 = vsel %vm435, %v794, %v878
    %v899 = vsel %vm435, %v795, %v879
    %v901 = vsel %vm452, %v667, 0
    %v904 = vsel %vm435, %v832, 0
    %v907 = vsel %vm435, %v833, 0
    %v910 = vsel %vm435, %v834, 0
    %v913 = vsel %vm435, %v835, 0
    %915 = vmatprep.subr.mxu0 %v885
    %916 = vmatpush1.msra.mxu0 %v884
    %917 = vmatprep.subr.mxu0 %v889
    %918 = vmatpush1.msra.mxu0 %v888
    %919 = vmatprep.subr.mxu0 %v893
    %920 = vmatpush1.msra.mxu0 %v892
    %921 = vmatprep.subr.mxu0 %v897
    %922 = vmatpush1.msra.mxu0 %v896
    %923 = vmatprep.subr.mxu0 %v907
    %924 = vmatpush1.msra.mxu0 %v904
    %925 = vmatprep.subr.mxu0 0.0
    %926 = vmatpush1.msra.mxu0 0.0
    %927 = vmatprep.subr.mxu0 0.0
    %928 = vmatpush1.msra.mxu0 0.0
    %929 = vmatprep.subr.mxu0 0.0
    %930 = vmatpush1.msra.mxu0 0.0
    %931 = vmatprep.subr.mxu0 0.0
    %932 = vmatpush1.msra.mxu0 0.0
    %933 = vmatprep.subr.mxu0 0.0
    %934 = vmatpush1.msra.mxu0 0.0
    %935 = vmatprep.subr.mxu0 0.0
    %936 = vmatpush1.msra.mxu0 0.0
    %937 = vmatprep.subr.mxu0 0.0
    %938 = vmatpush1.msra.mxu0 0.0
    %939 = vmatprep.subr.mxu0 0.0
    %940 = vmatpush1.msra.mxu0 0.0
    %941 = vmatprep.subr.mxu0 0.0
    %942 = vmatpush1.msra.mxu0 0.0
    %943 = vmatprep.subr.mxu0 0.0
    %944 = vmatpush1.msra.mxu0 0.0
    %945 = vmatprep.subr.mxu0 0.0
    %946 = vmatpush1.msra.mxu0 0.0
    %947 = vmatprep.subr.mxu0 0.0
    %948 = vmatpush1.msra.mxu0 0.0
    %949 = vmatprep.subr.mxu0 0.0
    %950 = vmatpush1.msra.mxu0 0.0
    %951 = vmatprep.subr.mxu0 0.0
    %952 = vmatpush1.msra.mxu0 0.0
    %953 = vmatprep.subr.mxu0 0.0
    %954 = vmatpush1.msra.mxu0 0.0
    %955 = vmatprep.subr.mxu0 0.0
    %956 = vmatpush1.msra.mxu0 0.0
    %957 = vmatprep.subr.mxu0 0.0
    %958 = vmatpush1.msra.mxu0 0.0
    %959 = vmatprep.subr.mxu0 0.0
    %960 = vmatpush1.msra.mxu0 0.0
    %961 = vmatprep.subr.mxu0 0.0
    %962 = vmatpush1.msra.mxu0 0.0
    %963 = vmatprep.subr.mxu0 0.0
    %964 = vmatpush1.msra.mxu0 0.0
    %965 = vmatprep.subr.mxu0 0.0
    %966 = vmatpush1.msra.mxu0 0.0
    %967 = vmatprep.subr.mxu0 0.0
    %968 = vmatpush1.msra.mxu0 0.0
    %969 = vmatprep.subr.mxu0 0.0
    %970 = vmatpush1.msra.mxu0 0.0
    %971 = vmatprep.subr.mxu0 0.0
    %972 = vmatpush1.msra.mxu0 0.0
    %973 = vmatprep.subr.mxu0 0.0
    %974 = vmatpush1.msra.mxu0 0.0
    %975 = vmatprep.subr.mxu0 0.0
    %976 = vmatpush1.msra.mxu0 0.0
    %977 = vmatprep.subr.mxu0 0.0
    %978 = vmatpush1.msra.mxu0 0.0
    %979 = vmatprep.mubr.f32.mxu0 0.0
    %980 = vmatmul.mubr.f32.gmra.mrb[0].mxu0 %v901
    %v981 = vpop.f32.mrb[0].mxu0
    %v982 = vadd.f32 0.0, %v981
    %v983 = vpop.f32.mrb[0].mxu0
    %v984 = vadd.f32 0.0, %v983
    %985 = vdwg.mxu0
    %986 = vmatprep.subr.mxu0 %v887
    %987 = vmatpush1.msra.mxu0 %v886
    %988 = vmatprep.subr.mxu0 %v891
    %989 = vmatpush1.msra.mxu0 %v890
    %990 = vmatprep.subr.mxu0 %v895
    %991 = vmatpush1.msra.mxu0 %v894
    %992 = vmatprep.subr.mxu0 %v899
    %993 = vmatpush1.msra.mxu0 %v898
    %994 = vmatprep.subr.mxu0 %v913
    %995 = vmatpush1.msra.mxu0 %v910
    %996 = vmatprep.subr.mxu0 0.0
    %997 = vmatpush1.msra.mxu0 0.0
    %998 = vmatprep.subr.mxu0 0.0
    %999 = vmatpush1.msra.mxu0 0.0
    %1000 = vmatprep.subr.mxu0 0.0
    %1001 = vmatpush1.msra.mxu0 0.0
    %1002 = vmatprep.subr.mxu0 0.0
    %1003 = vmatpush1.msra.mxu0 0.0
    %1004 = vmatprep.subr.mxu0 0.0
    %1005 = vmatpush1.msra.mxu0 0.0
    %1006 = vmatprep.subr.mxu0 0.0
    %1007 = vmatpush1.msra.mxu0 0.0
    %1008 = vmatprep.subr.mxu0 0.0
    %1009 = vmatpush1.msra.mxu0 0.0
    %1010 = vmatprep.subr.mxu0 0.0
    %1011 = vmatpush1.msra.mxu0 0.0
    %1012 = vmatprep.subr.mxu0 0.0
    %1013 = vmatpush1.msra.mxu0 0.0
    %1014 = vmatprep.subr.mxu0 0.0
    %1015 = vmatpush1.msra.mxu0 0.0
    %1016 = vmatprep.subr.mxu0 0.0
    %1017 = vmatpush1.msra.mxu0 0.0
    %1018 = vmatprep.subr.mxu0 0.0
    %1019 = vmatpush1.msra.mxu0 0.0
    %1020 = vmatprep.subr.mxu0 0.0
    %1021 = vmatpush1.msra.mxu0 0.0
    %1022 = vmatprep.subr.mxu0 0.0
    %1023 = vmatpush1.msra.mxu0 0.0
    %1024 = vmatprep.subr.mxu0 0.0
    %1025 = vmatpush1.msra.mxu0 0.0
    %1026 = vmatprep.subr.mxu0 0.0
    %1027 = vmatpush1.msra.mxu0 0.0
    %1028 = vmatprep.subr.mxu0 0.0
    %1029 = vmatpush1.msra.mxu0 0.0
    %1030 = vmatprep.subr.mxu0 0.0
    %1031 = vmatpush1.msra.mxu0 0.0
    %1032 = vmatprep.subr.mxu0 0.0
    %1033 = vmatpush1.msra.mxu0 0.0
    %1034 = vmatprep.subr.mxu0 0.0
    %1035 = vmatpush1.msra.mxu0 0.0
    %1036 = vmatprep.subr.mxu0 0.0
    %1037 = vmatpush1.msra.mxu0 0.0
    %1038 = vmatprep.subr.mxu0 0.0
    %1039 = vmatpush1.msra.mxu0 0.0
    %1040 = vmatprep.subr.mxu0 0.0
    %1041 = vmatpush1.msra.mxu0 0.0
    %1042 = vmatprep.subr.mxu0 0.0
    %1043 = vmatpush1.msra.mxu0 0.0
    %1044 = vmatprep.subr.mxu0 0.0
    %1045 = vmatpush1.msra.mxu0 0.0
    %1046 = vmatprep.subr.mxu0 0.0
    %1047 = vmatpush1.msra.mxu0 0.0
    %1048 = vmatprep.subr.mxu0 0.0
    %1049 = vmatpush1.msra.mxu0 0.0
    %1050 = vmatprep.mubr.f32.mxu0 0.0
    %1051 = vmatmul.mubr.f32.gmra.mrb[0].mxu0 %v901
    %v1052 = vpop.f32.mrb[0].mxu0
    %v1053 = vadd.f32 0.0, %v1052
    %v1054 = vpop.f32.mrb[0].mxu0
    %v1055 = vadd.f32 0.0, %v1054
    %1056 = vdwg.mxu0
    %v1057 = vsel %vm435, %v982, 0.0
    %v1058 = vsel %vm435, %v984, 0.0
    %v1059 = vadd.f32 %v1057, %v1058
    %v1060 = vsel %vm435, %v1053, 0.0
    %v1061 = vadd.f32 %v1059, %v1060
    %v1062 = vsel %vm435, %v1055, 0.0
    %v1063 = vadd.f32 %v1061, %v1062
    %1064 = vadd.xlane.f32.xlu0 %v1063
    %v1065 = vpop.xlane.xlu0 %1064
    %v1066 = vmul.f32 %v1065, 0.001953125
    %v1067 = vmul.f32 %v982, %v982
    %v1068 = vmul.f32 %v984, %v984
    %v1069 = vmul.f32 %v1053, %v1053
    %v1070 = vmul.f32 %v1055, %v1055
    %v1071 = vsel %vm435, %v1067, 0.0
    %v1072 = vsel %vm435, %v1068, 0.0
    %v1073 = vadd.f32 %v1071, %v1072
    %v1074 = vsel %vm435, %v1069, 0.0
    %v1075 = vadd.f32 %v1073, %v1074
    %v1076 = vsel %vm435, %v1070, 0.0
    %v1077 = vadd.f32 %v1075, %v1076
    %1078 = vadd.xlane.f32.xlu0 %v1077
    %v1079 = vpop.xlane.xlu0 %1078
    %v1080 = vmul.f32 %v1079, 0.001953125
    %v1081 = vmul.f32 %v1066, %v1066
    %v1082 = vsub.f32 %v1080, %v1081
    %v1083 = vadd.f32 %v1082, 1e-05
    %v1084 = vrsqrt.pop %v1083
    %v1085 = vld [vmem:[%s6] sm:$0xf]
    %v1086 = vmul.f32 %v1084, %v1085
    %v1087 = vsub.f32 %v982, %v1066
    %v1088 = vsub.f32 %v984, %v1066
    %v1089 = vsub.f32 %v1053, %v1066
    %v1090 = vsub.f32 %v1055, %v1066
    %1092 = vset.pattern.permute.xlu0 0
    %1093 = vperm.xlu0 %1092, %v1086
    %v1094 = vpop.permute.xlu0 %1093
    %v1096 = vmul.f32 %v1087, %v1094
    %v1097 = vmul.f32 %v1088, %v1094
    %v1098 = vmul.f32 %v1089, %v1094
    %v1099 = vmul.f32 %v1090, %v1094
    %v1100 = vld [vmem:[%s7] sm:$0xf]
    %1102 = vset.pattern.permute.xlu0 0
    %1103 = vperm.xlu0 %1102, %v1100
    %v1104 = vpop.permute.xlu0 %1103
    %v1106 = vadd.f32 %v1096, %v1104
    %v1107 = vadd.f32 %v1097, %v1104
    %v1108 = vadd.f32 %v1098, %v1104
    %v1109 = vadd.f32 %v1099, %v1104
    %v1112 = vadd.f32 %v1106, %v44
    %v1113 = vadd.f32 %v1107, %v57
    %v1114 = vadd.f32 %v1108, %v45
    %v1115 = vadd.f32 %v1109, %v58
    %v1116 = vmax.f32 %v1112, 0.0
    %v1117 = vmax.f32 %v1113, 0.0
    %v1118 = vmax.f32 %v1114, 0.0
    %v1119 = vmax.f32 %v1115, 0.0
    %v1124 = vcombine.low %v1116, %v1117
    %v1125 = vcombine.low %v1118, %v1119
    %1128 = vst [vmem:[#allocation5] sm:$0xff] %v1124
    %1129 = vst [vmem:[#allocation5 + $0x8] sm:$0xff] %v1125
    // Predicated region
    $region38: #{tpu_custom_call.1} parent=1 // pred_check
      _
    $region39: #{tpu_custom_call.1} parent=1 // pred_check_branch
      %1131 = sbr.rel (0) target = $region41
    $region40: #{tpu_custom_call.1} parent=1 // pred_region
      %s1133 = ssub.s32 256, 256
      %1134 = vsyncadd [#allocation4], %s1133
      %s1136 = sshll.u32 [#allocation5], 4
      %s1137 = int_to_ptr.vmem [resolvable:$true] %s1136
      %1139 = dma.vmem_to_hbm [thread:$0]  %s1137, 256, %s8, [#allocation4]
    $region41: #{tpu_custom_call.1} parent=1 // pred_fallthru
      _
    // Predicated region
    $region42: #{tpu_custom_call.1} parent=1 // pred_check
      _
    $region43: #{tpu_custom_call.1} parent=1 // pred_check_branch
      %1141 = sbr.rel (0) target = $region45
    $region44: #{tpu_custom_call.1} parent=1 // pred_region
      %1142 = dma.done [#allocation4], 256
    $region45: #{tpu_custom_call.1} parent=1 // pred_fallthru
      _
    %1143 = vsyncpa [#allocation3], 1
    %1144 = vsyncpa [#allocation4], 1

</llo_original>
